<compile_context>
chip_gen: v7x
topology: tpu7x:2x2x1
jax: 0.10.0
libtpu: 0.0.40
codegen_flags: <defaults>
</compile_context>

<pallas_src>
import functools
import math

import jax
import jax.numpy as jnp
from jax.experimental import pallas as pl
from jax.experimental.pallas import tpu as pltpu

_LANE = 128


def _round_up(x, m):
    return ((x + m - 1) // m) * m


def _pick_tile(n_pad, cap):
    """Largest tile <= cap dividing n_pad (n_pad is a multiple of 128)."""
    t = min(cap, n_pad)
    while n_pad % t:
        t //= 2
    return t


# --------------------------------------------------------------------------
# Kernels
# --------------------------------------------------------------------------
def _transform_kernel(seed_ref, feat_ref, w_ref, bias_ref, out_ref, *,
                      dropout_rate, training, add_bias):
    """One row stripe of H0 = dropout(features @ W) [+ bias]."""
    h = jnp.dot(feat_ref[...], w_ref[...], preferred_element_type=jnp.float32)

    if training and dropout_rate > 0.0:
        # Per-stripe seed: mix the SMEM seed with the grid position.
        pltpu.prng_seed(seed_ref[0] + pl.program_id(0))
        bits = pltpu.bitcast(pltpu.prng_random_bits(h.shape), jnp.uint32)
        # Integer-domain keep test: drop iff bits < round(p * 2^32).
        thresh = jnp.uint32(min(int(round(dropout_rate * (1 << 32))), (1 << 32) - 1))
        keep = bits >= thresh
        h = jnp.where(keep, h * (1.0 / (1.0 - dropout_rate)), 0.0)

    if add_bias:
        h = h + bias_ref[...]
    out_ref[...] = h.astype(out_ref.dtype)


def _propagate_kernel(adj_ref, h_ref, bias_ref, out_ref, acc_ref, *, add_bias):
    """One (row-stripe, K-stripe) step of H <- A @ H with an f32 accumulator."""
    @pl.when(pl.program_id(1) == 0)
    def _():
        acc_ref[...] = jnp.zeros_like(acc_ref)

    acc_ref[...] += jnp.dot(adj_ref[...], h_ref[...],
                            preferred_element_type=jnp.float32)

    @pl.when(pl.program_id(1) == pl.num_programs(1) - 1)
    def _():
        r = acc_ref[...]
        if add_bias:
            r = r + bias_ref[...]
        out_ref[...] = r.astype(out_ref.dtype)


# --------------------------------------------------------------------------
# Wrapper
# --------------------------------------------------------------------------
def dense_ngcn_layer(adj_indices, adj_values, features, weight, bias, *,
                     iterations, dropout_rate=0.0, training=False, seed=0,
                     compute_dtype=jnp.bfloat16,
                     row_tile_cap=512, k_tile_cap=512):
    """Pallas implementation of DenseNGCNLayer.forward.

    adj_indices: (2, nnz) int32, adj_values: (nnz,) float32 — sparse normalized
    adjacency.  Densified (JAX glue) and streamed through the kernels in bf16.
    Returns float32 (N, Cout).
    """
    n, cin = features.shape
    cout = weight.shape[1]

    np_ = _round_up(n, _LANE)       # padded graph size (rows & cols of A)
    cin_p = _round_up(cin, _LANE)   # padded input channels (matmul K)
    cp = _round_up(cout, _LANE)     # lane-dense output channels

    itemsize = jnp.dtype(compute_dtype).itemsize
    tm = _pick_tile(np_, row_tile_cap)   # row stripe
    tk = _pick_tile(np_, k_tile_cap)     # reduction stripe over columns of A

    # ---- glue: densify + zero-pad (zeros never change the real rows/cols) ----
    adj = jnp.zeros((np_, np_), jnp.float32).at[
        adj_indices[0], adj_indices[1]].add(adj_values).astype(compute_dtype)
    feat_p = jnp.zeros((np_, cin_p), compute_dtype).at[:n, :cin].set(
        features.astype(compute_dtype))
    w_p = jnp.zeros((cin_p, cp), compute_dtype).at[:cin, :cout].set(
        weight.astype(compute_dtype))
    bias_p = jnp.zeros((1, cp), jnp.float32).at[:, :cout].set(
        bias.astype(jnp.float32))
    seed_arr = jnp.asarray([seed], jnp.int32)

    # ---- VMEM budget (double-buffered blocks + accumulator), with headroom ----
    prop_need = (2 * (tm * tk * itemsize + tk * cp * itemsize + tm * cp * 4)
                 + tm * cp * 4 + 2 * cp * 4)
    xform_need = 2 * (tm * cin_p * itemsize + cin_p * cp * itemsize
                      + cp * 4 + tm * cp * 4)
    vmem_limit = int(min(48 << 20, max(16 << 20, 2 * max(prop_need, xform_need))))

    n_row_tiles = np_ // tm
    n_k_tiles = np_ // tk

    # ---- stage 1: H0 = dropout(features @ W) (+bias if there is no propagation) ----
    add_bias0 = iterations <= 1
    out0_dtype = jnp.float32 if add_bias0 else compute_dtype
    xform_bytes = (np_ * cin_p * itemsize
                   + n_row_tiles * (cin_p * cp * itemsize + cp * 4)
                   + np_ * cp * jnp.dtype(out0_dtype).itemsize)
    h = pl.pallas_call(
        functools.partial(_transform_kernel, dropout_rate=dropout_rate,
                          training=training, add_bias=add_bias0),
        out_shape=jax.ShapeDtypeStruct((np_, cp), out0_dtype),
        grid_spec=pltpu.PrefetchScalarGridSpec(
            num_scalar_prefetch=1,
            grid=(n_row_tiles,),
            in_specs=[pl.BlockSpec((tm, cin_p), lambda i, s: (i, 0)),
                      pl.BlockSpec((cin_p, cp), lambda i, s: (0, 0)),
                      pl.BlockSpec((1, cp), lambda i, s: (0, 0))],
            out_specs=pl.BlockSpec((tm, cp), lambda i, s: (i, 0))),
        compiler_params=pltpu.CompilerParams(
            dimension_semantics=("parallel",),
            vmem_limit_bytes=vmem_limit),
        cost_estimate=pl.CostEstimate(flops=2 * np_ * cin_p * cp,
                                      transcendentals=0,
                                      bytes_accessed=int(xform_bytes)),
    )(seed_arr, feat_p, w_p, bias_p)

    # ---- stage 2: (iterations - 1) hops of H <- A @ H, bias fused into the last ----
    for it in range(iterations - 1):
        last = it == iterations - 2
        out_dtype = jnp.float32 if last else compute_dtype
        prop_bytes = (np_ * np_ * itemsize                       # A streamed once
                      + n_row_tiles * np_ * cp * itemsize        # H re-read per stripe
                      + n_row_tiles * cp * 4                     # bias
                      + np_ * cp * jnp.dtype(out_dtype).itemsize)
        h = pl.pallas_call(
            functools.partial(_propagate_kernel, add_bias=last),
            out_shape=jax.ShapeDtypeStruct((np_, cp), out_dtype),
            grid_spec=pltpu.PrefetchScalarGridSpec(
                num_scalar_prefetch=0,
                grid=(n_row_tiles, n_k_tiles),
                in_specs=[pl.BlockSpec((tm, tk), lambda i, k: (i, k)),
                          pl.BlockSpec((tk, cp), lambda i, k: (k, 0)),
                          pl.BlockSpec((1, cp), lambda i, k: (0, 0))],
                out_specs=pl.BlockSpec((tm, cp), lambda i, k: (i, 0)),
                scratch_shapes=[pltpu.VMEM((tm, cp), jnp.float32)]),
            compiler_params=pltpu.CompilerParams(
                dimension_semantics=("parallel", "arbitrary"),
                vmem_limit_bytes=vmem_limit),
            cost_estimate=pl.CostEstimate(flops=2 * np_ * np_ * cp,
                                          transcendentals=0,
                                          bytes_accessed=int(prop_bytes)),
        )(adj, h.astype(compute_dtype), bias_p)

    return h[:n, :cout]


def _xavier_uniform(key, shape):
    fan_in, fan_out = shape[0], shape[1]
    bound = math.sqrt(6.0 / (fan_in + fan_out))
    return jax.random.uniform(key, shape, jnp.float32, minval=-bound, maxval=bound)


if __name__ == "__main__":
    # Small, deterministic problem (matches the module's 2-D graph-layer shapes).
    N, C_IN, C_OUT = 64, 32, 16
    ITERATIONS = 3
    DROPOUT = 0.5          # eval mode -> dropout is identity (training=False)

    key = jax.random.PRNGKey(0)
    k_feat, k_w, k_b = jax.random.split(key, 3)

    features = jax.random.normal(k_feat, (N, C_IN), jnp.float32)
    weight = _xavier_uniform(k_w, (C_IN, C_OUT))     # torch.nn.init.xavier_uniform_
    bias = _xavier_uniform(k_b, (1, C_OUT))

    # Deterministic normalized adjacency: self-loops + ring edges, constant degree 3.
    rows = jnp.concatenate([jnp.arange(N), jnp.arange(N), jnp.arange(N)])
    cols = jnp.concatenate([jnp.arange(N), (jnp.arange(N) + 1) % N,
                            (jnp.arange(N) - 1) % N])
    indices = jnp.stack([rows, cols]).astype(jnp.int32)
    values = jnp.full((indices.shape[1],), 1.0 / 3.0, jnp.float32)

    out = dense_ngcn_layer(indices, values, features, weight, bias,
                           iterations=ITERATIONS, dropout_rate=DROPOUT,
                           training=False)
    out = jax.block_until_ready(out)

    # Pure-JAX reference mirroring the kernel's dtype flow
    # (bf16 MXU inputs, f32 accumulation, bf16 intermediate H).
    cd = jnp.bfloat16
    adj_dense = jnp.zeros((N, N), jnp.float32).at[indices[0], indices[1]].add(values)
    ref = jnp.dot(features.astype(cd), weight.astype(cd),
                  preferred_element_type=jnp.float32)
    for _ in range(ITERATIONS - 1):
        ref = jnp.dot(adj_dense.astype(cd), ref.astype(cd),
                      preferred_element_type=jnp.float32)
    ref = ref + bias

    assert out.shape == (N, C_OUT)
    assert out.dtype == jnp.float32
    assert jnp.allclose(out, ref, atol=2e-3, rtol=2e-3), \
        float(jnp.max(jnp.abs(out - ref)))
    print("KERNEL_OK")
</pallas_src>

<mosaic_0001>
module attributes {stable_mosaic.version = 11 : i64} {
  func.func @_transform_kernel(%arg0: i32, %arg1: memref<1xi32, #tpu.memory_space<smem>>, %arg2: memref<128x128xbf16, #tpu.memory_space<vmem>>, %arg3: memref<128x128xbf16, #tpu.memory_space<vmem>>, %arg4: memref<1x128xf32, #tpu.memory_space<vmem>>, %arg5: memref<128x128xbf16, #tpu.memory_space<vmem>>) attributes {dimension_semantics = [#tpu.dimension_semantics<parallel>], iteration_bounds = array<i64: 1>, scalar_prefetch = 1 : i64, scratch_operands = 0 : i64, tpu.core_type = #tpu.core_type<tc>, window_params = [{transform_indices = @transform_0, window_bounds = array<i64: 128, 128>}, {pipeline_mode = #tpu.pipeline_mode<synchronous>, transform_indices = @transform_1, window_bounds = array<i64: 128, 128>}, {pipeline_mode = #tpu.pipeline_mode<synchronous>, transform_indices = @transform_2, window_bounds = array<i64: 1, 128>}, {transform_indices = @transform_3, window_bounds = array<i64: 128, 128>}]} {
    %c0 = arith.constant 0 : index
    %c0_0 = arith.constant 0 : index
    %0 = vector.load %arg2[%c0, %c0_0] : memref<128x128xbf16, #tpu.memory_space<vmem>>, vector<128x128xbf16>
    %c0_1 = arith.constant 0 : index
    %c0_2 = arith.constant 0 : index
    %1 = vector.load %arg3[%c0_1, %c0_2] : memref<128x128xbf16, #tpu.memory_space<vmem>>, vector<128x128xbf16>
    %cst = arith.constant dense<0.000000e+00> : vector<128x128xf32>
    %2 = tpu.matmul %0, %1, %cst {dimension_numbers = #tpu.dot_dimension_numbers<[1], [0], [0], [1], [0, 0, 1, 1], [], []>} : vector<128x128xbf16>, vector<128x128xbf16>, vector<128x128xf32> -> vector<128x128xf32>
    %3 = arith.truncf %2 : vector<128x128xf32> to vector<128x128xbf16>
    %c0_3 = arith.constant 0 : index
    %c0_4 = arith.constant 0 : index
    %4 = vector.load %arg5[%c0_3, %c0_4] : memref<128x128xbf16, #tpu.memory_space<vmem>>, vector<128x128xbf16>
    tpu.vector_store %arg5[%c0_3, %c0_4], %3 {strides = array<i32>} : memref<128x128xbf16, #tpu.memory_space<vmem>>, vector<128x128xbf16>,
    return
  }
  func.func @transform_0(%arg0: i32, %arg1: memref<1xi32, #tpu.memory_space<smem>>) -> (i32, i32) {
    %c0_i32 = arith.constant 0 : i32
    %c0_i32_0 = arith.constant 0 : i32
    return %arg0, %c0_i32 : i32, i32
  }
  func.func @transform_1(%arg0: i32, %arg1: memref<1xi32, #tpu.memory_space<smem>>) -> (i32, i32) {
    %c0_i32 = arith.constant 0 : i32
    %c0_i32_0 = arith.constant 0 : i32
    %c0_i32_1 = arith.constant 0 : i32
    return %c0_i32, %c0_i32_0 : i32, i32
  }
  func.func @transform_2(%arg0: i32, %arg1: memref<1xi32, #tpu.memory_space<smem>>) -> (i32, i32) {
    %c0_i32 = arith.constant 0 : i32
    %c0_i32_0 = arith.constant 0 : i32
    %c0_i32_1 = arith.constant 0 : i32
    return %c0_i32, %c0_i32_0 : i32, i32
  }
  func.func @transform_3(%arg0: i32, %arg1: memref<1xi32, #tpu.memory_space<smem>>) -> (i32, i32) {
    %c0_i32 = arith.constant 0 : i32
    %c0_i32_0 = arith.constant 0 : i32
    return %arg0, %c0_i32 : i32, i32
  }
}

</mosaic_0001>

<llo_original>
// kernel: tpu_custom_call.1
$region0: #{tpu_custom_call.1}
  #allocation0 [shape = 'u32[]', space=smem, size = 0x4, offset = 0x4, fixed_abs, tag = 'smem constant byte address 0x4 - core index']
  #allocation1 [shape = 'u32[144,128]{1,0:T(1,128)}', space=vmem, size = 0x12000, scoped, tag = 'internal scratch']
  #allocation2 [shape = 's32[1]{0}', space=sflag, size = 0x4, scoped, tag = 'scoped memory for tpu_custom_call.1']
  #allocation3 [shape = 's32[1]{0:T(128)S(6)}', space=smem, size = 0x200, scoped, tag = 'prefetched SMEM operand 0']
  %s0 = inlined_call_operand.<no memory space> [shape: s32[1], index: 0, kind: input, shape index: {}]
  %s1 = inlined_call_operand.hbm [shape: bf16[128,128], index: 1, kind: input, shape index: {}]
  %s2 = inlined_call_operand.hbm [shape: bf16[128,128], index: 2, kind: input, shape index: {}]
  %s3 = inlined_call_operand.vmem [shape: f32[1,128], index: 3, kind: input, shape index: {}]
  %s4 = inlined_call_operand.hbm [shape: bf16[128,128], index: 4, kind: output, shape index: {}]
  %s5 = sld [smem:[#allocation0]]
  $region30: #{tpu_custom_call.1} parent=0
    _
  %s7 = ssub.s32 1, %s5
  %s8 = scalar_select 0, %s7, %s5
  %9 = sst [smem:[#allocation3]] %s0
  $region1: #{tpu_custom_call.1} parent=0
    #allocation4 [shape = 'u8[32768]{0}', space=vmem, size = 0x8000, scoped, tag = 'input window, operand 1, single buffered']
    #allocation5 [shape = 's32[1]{0}', space=sflag, size = 0x4, scoped, tag = 'scoped memory for tpu_custom_call.1']
    #allocation6 [shape = 's32[1]{0}', space=sflag, size = 0x4, scoped, tag = 'scoped memory for tpu_custom_call.1']
    #allocation7 [shape = 'u8[32768]{0}', space=vmem, size = 0x8000, scoped, tag = 'input window, operand 2, single buffered']
    #allocation8 [shape = 's32[1]{0}', space=sflag, size = 0x4, scoped, tag = 'scoped memory for tpu_custom_call.1']
    #allocation9 [shape = 'u8[32768]{0}', space=vmem, size = 0x8000, scoped, tag = 'output window, operand 0, single buffered']
    %10 = vsyncpa [#allocation5], 0
    %11 = vsyncpa [#allocation8], 0
    %12 = vsyncpa [#allocation6], 0
    // Predicated region
    $region2: #{tpu_custom_call.1} parent=1 // pred_check
      _
    $region3: #{tpu_custom_call.1} parent=1 // pred_check_branch
      %14 = sbr.rel (0) target = $region5
    $region4: #{tpu_custom_call.1} parent=1 // pred_region
      %s16 = ssub.s32 1024, 1024
      %17 = vsyncadd [#allocation5], %s16
      %s18 = sshll.u32 [#allocation4], 4
      %s19 = int_to_ptr.vmem [resolvable:$true] %s18
      %24 = dma.hbm_to_vmem [thread:$0]  %s1, 1024, %s19, [#allocation5], 64, 64, 4
    $region5: #{tpu_custom_call.1} parent=1 // pred_fallthru
      _
    // Predicated region
    $region6: #{tpu_custom_call.1} parent=1 // pred_check
      _
    $region7: #{tpu_custom_call.1} parent=1 // pred_check_branch
      %26 = sbr.rel (0) target = $region9
    $region8: #{tpu_custom_call.1} parent=1 // pred_region
      %s28 = ssub.s32 1024, 1024
      %29 = vsyncadd [#allocation8], %s28
      %s30 = sshll.u32 [#allocation7], 4
      %s31 = int_to_ptr.vmem [resolvable:$true] %s30
      %36 = dma.hbm_to_vmem [thread:$0]  %s2, 1024, %s31, [#allocation8], 64, 64, 4
    $region9: #{tpu_custom_call.1} parent=1 // pred_fallthru
      _
    // Predicated region
    $region10: #{tpu_custom_call.1} parent=1 // pred_check
      _
    $region11: #{tpu_custom_call.1} parent=1 // pred_check_branch
      %38 = sbr.rel (0) target = $region13
    $region12: #{tpu_custom_call.1} parent=1 // pred_region
      _
    $region13: #{tpu_custom_call.1} parent=1 // pred_fallthru
      _
    // Predicated region
    $region14: #{tpu_custom_call.1} parent=1 // pred_check
      _
    $region15: #{tpu_custom_call.1} parent=1 // pred_check_branch
      %40 = sbr.rel (0) target = $region17
    $region16: #{tpu_custom_call.1} parent=1 // pred_region
      %41 = dma.done [#allocation5], 1024
    $region17: #{tpu_custom_call.1} parent=1 // pred_fallthru
      _
    // Predicated region
    $region18: #{tpu_custom_call.1} parent=1 // pred_check
      _
    $region19: #{tpu_custom_call.1} parent=1 // pred_check_branch
      %43 = sbr.rel (0) target = $region21
    $region20: #{tpu_custom_call.1} parent=1 // pred_region
      %44 = dma.done [#allocation8], 1024
    $region21: #{tpu_custom_call.1} parent=1 // pred_fallthru
      _
    %v46 = vld [vmem:[#allocation4] sm:$0xf]
    %v47 = vld [vmem:[#allocation4 + $0x4] sm:$0xf]
    %v48 = vld [vmem:[#allocation4 + $0x8] sm:$0xf]
    %v49 = vld [vmem:[#allocation4 + $0xc] sm:$0xf]
    %v50 = vld [vmem:[#allocation4 + $0x10] sm:$0xf]
    %v51 = vld [vmem:[#allocation4 + $0x14] sm:$0xf]
    %v52 = vld [vmem:[#allocation4 + $0x18] sm:$0xf]
    %v53 = vld [vmem:[#allocation4 + $0x1c] sm:$0xf]
    %v54 = vld [vmem:[#allocation4 + $0x20] sm:$0xf]
    %v55 = vld [vmem:[#allocation4 + $0x24] sm:$0xf]
    %v56 = vld [vmem:[#allocation4 + $0x28] sm:$0xf]
    %v57 = vld [vmem:[#allocation4 + $0x2c] sm:$0xf]
    %v58 = vld [vmem:[#allocation4 + $0x30] sm:$0xf]
    %v59 = vld [vmem:[#allocation4 + $0x34] sm:$0xf]
    %v60 = vld [vmem:[#allocation4 + $0x38] sm:$0xf]
    %v61 = vld [vmem:[#allocation4 + $0x3c] sm:$0xf]
    %v62 = vld [vmem:[#allocation7] sm:$0xf]
    %v63 = vld [vmem:[#allocation7 + $0x4] sm:$0xf]
    %v64 = vld [vmem:[#allocation7 + $0x8] sm:$0xf]
    %v65 = vld [vmem:[#allocation7 + $0xc] sm:$0xf]
    %v66 = vld [vmem:[#allocation7 + $0x10] sm:$0xf]
    %v67 = vld [vmem:[#allocation7 + $0x14] sm:$0xf]
    %v68 = vld [vmem:[#allocation7 + $0x18] sm:$0xf]
    %v69 = vld [vmem:[#allocation7 + $0x1c] sm:$0xf]
    %v70 = vld [vmem:[#allocation7 + $0x20] sm:$0xf]
    %v71 = vld [vmem:[#allocation7 + $0x24] sm:$0xf]
    %v72 = vld [vmem:[#allocation7 + $0x28] sm:$0xf]
    %v73 = vld [vmem:[#allocation7 + $0x2c] sm:$0xf]
    %v74 = vld [vmem:[#allocation7 + $0x30] sm:$0xf]
    %v75 = vld [vmem:[#allocation7 + $0x34] sm:$0xf]
    %v76 = vld [vmem:[#allocation7 + $0x38] sm:$0xf]
    %v77 = vld [vmem:[#allocation7 + $0x3c] sm:$0xf]
    %v94 = vunpack.c.l.b16 %v46
    %v95 = vunpack.c.l.b16 %v47
    %v96 = vunpack.c.l.b16 %v48
    %v97 = vunpack.c.l.b16 %v49
    %v98 = vunpack.c.l.b16 %v50
    %v99 = vunpack.c.l.b16 %v51
    %v100 = vunpack.c.l.b16 %v52
    %v101 = vunpack.c.l.b16 %v53
    %v102 = vunpack.c.l.b16 %v54
    %v103 = vunpack.c.l.b16 %v55
    %v104 = vunpack.c.l.b16 %v56
    %v105 = vunpack.c.l.b16 %v57
    %v106 = vunpack.c.l.b16 %v58
    %v107 = vunpack.c.l.b16 %v59
    %v108 = vunpack.c.l.b16 %v60
    %v109 = vunpack.c.l.b16 %v61
    %v110 = vpack.c.b16 %v95, %v94
    %v111 = vpack.c.b16 %v97, %v96
    %v112 = vpack.c.b16 %v99, %v98
    %v113 = vpack.c.b16 %v101, %v100
    %v114 = vpack.c.b16 %v103, %v102
    %v115 = vpack.c.b16 %v105, %v104
    %v116 = vpack.c.b16 %v107, %v106
    %v117 = vpack.c.b16 %v109, %v108
    %v142 = vunpack.c.l.b16 %v62
    %v143 = vunpack.c.l.b16 %v63
    %v144 = vunpack.c.l.b16 %v64
    %v145 = vunpack.c.l.b16 %v65
    %v146 = vunpack.c.l.b16 %v66
    %v147 = vunpack.c.l.b16 %v67
    %v148 = vunpack.c.l.b16 %v68
    %v149 = vunpack.c.l.b16 %v69
    %v150 = vunpack.c.l.b16 %v70
    %v151 = vunpack.c.l.b16 %v71
    %v152 = vunpack.c.l.b16 %v72
    %v153 = vunpack.c.l.b16 %v73
    %v154 = vunpack.c.l.b16 %v74
    %v155 = vunpack.c.l.b16 %v75
    %v156 = vunpack.c.l.b16 %v76
    %v157 = vunpack.c.l.b16 %v77
    %v158 = vpack.c.b16 %v143, %v142
    %v159 = vpack.c.b16 %v145, %v144
    %v160 = vpack.c.b16 %v147, %v146
    %v161 = vpack.c.b16 %v149, %v148
    %v162 = vpack.c.b16 %v151, %v150
    %v163 = vpack.c.b16 %v153, %v152
    %v164 = vpack.c.b16 %v155, %v154
    %v165 = vpack.c.b16 %v157, %v156
    %174 = vmatprep.subr.bf16.mxu0 0
    %175 = vmatpush1.bf16.msra.mxu0 %v158
    %176 = vmatprep.subr.bf16.mxu0 0
    %177 = vmatpush1.bf16.msra.mxu0 %v159
    %178 = vmatprep.subr.bf16.mxu0 0
    %179 = vmatpush1.bf16.msra.mxu0 %v160
    %180 = vmatprep.subr.bf16.mxu0 0
    %181 = vmatpush1.bf16.msra.mxu0 %v161
    %182 = vmatprep.subr.bf16.mxu0 0
    %183 = vmatpush1.bf16.msra.mxu0 %v162
    %184 = vmatprep.subr.bf16.mxu0 0
    %185 = vmatpush1.bf16.msra.mxu0 %v163
    %186 = vmatprep.subr.bf16.mxu0 0
    %187 = vmatpush1.bf16.msra.mxu0 %v164
    %188 = vmatprep.subr.bf16.mxu0 0
    %189 = vmatpush1.bf16.msra.mxu0 %v165
    %190 = vmatprep.subr.bf16.mxu0 0
    %191 = vmatpush1.bf16.msra.mxu0 0
    %192 = vmatprep.subr.bf16.mxu0 0
    %193 = vmatpush1.bf16.msra.mxu0 0
    %194 = vmatprep.subr.bf16.mxu0 0
    %195 = vmatpush1.bf16.msra.mxu0 0
    %196 = vmatprep.subr.bf16.mxu0 0
    %197 = vmatpush1.bf16.msra.mxu0 0
    %198 = vmatprep.subr.bf16.mxu0 0
    %199 = vmatpush1.bf16.msra.mxu0 0
    %200 = vmatprep.subr.bf16.mxu0 0
    %201 = vmatpush1.bf16.msra.mxu0 0
    %202 = vmatprep.subr.bf16.mxu0 0
    %203 = vmatpush1.bf16.msra.mxu0 0
    %204 = vmatprep.subr.bf16.mxu0 0
    %205 = vmatpush1.bf16.msra.mxu0 0
    %206 = vmatprep.mubr.bf16.mxu0 0
    %207 = vmatmul.mubr.bf16.gmra.mrb[0].mxu0 %v110
    %v208 = vpop.f32.mrb[0].mxu0
    %v209 = vadd.f32 0.0, %v208
    %v210 = vpop.f32.mrb[0].mxu0
    %v211 = vpop.f32.mrb[0].mxu0
    %v212 = vadd.f32 0.0, %v211
    %v213 = vpop.f32.mrb[0].mxu0
    %214 = vmatprep.mubr.bf16.mxu0 0
    %215 = vmatmul.mubr.bf16.gmra.mrb[0].mxu0 %v111
    %v216 = vpop.f32.mrb[0].mxu0
    %v217 = vadd.f32 0.0, %v216
    %v218 = vpop.f32.mrb[0].mxu0
    %v219 = vpop.f32.mrb[0].mxu0
    %v220 = vadd.f32 0.0, %v219
    %v221 = vpop.f32.mrb[0].mxu0
    %222 = vmatprep.mubr.bf16.mxu0 0
    %223 = vmatmul.mubr.bf16.gmra.mrb[0].mxu0 %v112
    %v224 = vpop.f32.mrb[0].mxu0
    %v225 = vadd.f32 0.0, %v224
    %v226 = vpop.f32.mrb[0].mxu0
    %v227 = vpop.f32.mrb[0].mxu0
    %v228 = vadd.f32 0.0, %v227
    %v229 = vpop.f32.mrb[0].mxu0
    %230 = vmatprep.mubr.bf16.mxu0 0
    %231 = vmatmul.mubr.bf16.gmra.mrb[0].mxu0 %v113
    %v232 = vpop.f32.mrb[0].mxu0
    %v233 = vadd.f32 0.0, %v232
    %v234 = vpop.f32.mrb[0].mxu0
    %v235 = vpop.f32.mrb[0].mxu0
    %v236 = vadd.f32 0.0, %v235
    %v237 = vpop.f32.mrb[0].mxu0
    %238 = vmatprep.mubr.bf16.mxu0 0
    %239 = vmatmul.mubr.bf16.gmra.mrb[0].mxu0 %v114
    %v240 = vpop.f32.mrb[0].mxu0
    %v241 = vadd.f32 0.0, %v240
    %v242 = vpop.f32.mrb[0].mxu0
    %v243 = vpop.f32.mrb[0].mxu0
    %v244 = vadd.f32 0.0, %v243
    %v245 = vpop.f32.mrb[0].mxu0
    %246 = vmatprep.mubr.bf16.mxu0 0
    %247 = vmatmul.mubr.bf16.gmra.mrb[0].mxu0 %v115
    %v248 = vpop.f32.mrb[0].mxu0
    %v249 = vadd.f32 0.0, %v248
    %v250 = vpop.f32.mrb[0].mxu0
    %v251 = vpop.f32.mrb[0].mxu0
    %v252 = vadd.f32 0.0, %v251
    %v253 = vpop.f32.mrb[0].mxu0
    %254 = vmatprep.mubr.bf16.mxu0 0
    %255 = vmatmul.mubr.bf16.gmra.mrb[0].mxu0 %v116
    %v256 = vpop.f32.mrb[0].mxu0
    %v257 = vadd.f32 0.0, %v256
    %v258 = vpop.f32.mrb[0].mxu0
    %v259 = vpop.f32.mrb[0].mxu0
    %v260 = vadd.f32 0.0, %v259
    %v261 = vpop.f32.mrb[0].mxu0
    %262 = vmatprep.mubr.bf16.mxu0 0
    %263 = vmatmul.mubr.bf16.gmra.mrb[0].mxu0 %v117
    %v264 = vpop.f32.mrb[0].mxu0
    %v265 = vadd.f32 0.0, %v264
    %v266 = vpop.f32.mrb[0].mxu0
    %v267 = vpop.f32.mrb[0].mxu0
    %v268 = vadd.f32 0.0, %v267
    %v269 = vpop.f32.mrb[0].mxu0
    %270 = vdwg.mxu0
    %v271 = vpack.c.bf16 %v212, %v209
    %v272 = vpack.c.bf16 %v220, %v217
    %v273 = vpack.c.bf16 %v228, %v225
    %v274 = vpack.c.bf16 %v236, %v233
    %v275 = vpack.c.bf16 %v244, %v241
    %v276 = vpack.c.bf16 %v252, %v249
    %v277 = vpack.c.bf16 %v260, %v257
    %v278 = vpack.c.bf16 %v268, %v265
    %v287 = vunpack.c.l.b16 %v271
    %v288 = vunpack.c.h.b16 %v271
    %v289 = vunpack.c.l.b16 %v272
    %v290 = vunpack.c.h.b16 %v272
    %v291 = vunpack.c.l.b16 %v273
    %v292 = vunpack.c.h.b16 %v273
    %v293 = vunpack.c.l.b16 %v274
    %v294 = vunpack.c.h.b16 %v274
    %v295 = vunpack.c.l.b16 %v275
    %v296 = vunpack.c.h.b16 %v275
    %v297 = vunpack.c.l.b16 %v276
    %v298 = vunpack.c.h.b16 %v276
    %v299 = vunpack.c.l.b16 %v277
    %v300 = vunpack.c.h.b16 %v277
    %v301 = vunpack.c.l.b16 %v278
    %v302 = vunpack.c.h.b16 %v278
    %v303 = vpack.c.b16 %v287, %v287
    %v304 = vpack.c.b16 %v288, %v288
    %v305 = vpack.c.b16 %v289, %v289
    %v306 = vpack.c.b16 %v290, %v290
    %v307 = vpack.c.b16 %v291, %v291
    %v308 = vpack.c.b16 %v292, %v292
    %v309 = vpack.c.b16 %v293, %v293
    %v310 = vpack.c.b16 %v294, %v294
    %v311 = vpack.c.b16 %v295, %v295
    %v312 = vpack.c.b16 %v296, %v296
    %v313 = vpack.c.b16 %v297, %v297
    %v314 = vpack.c.b16 %v298, %v298
    %v315 = vpack.c.b16 %v299, %v299
    %v316 = vpack.c.b16 %v300, %v300
    %v317 = vpack.c.b16 %v301, %v301
    %v318 = vpack.c.b16 %v302, %v302
    %335 = vst [vmem:[#allocation9] sm:$0xf] %v303
    %336 = vst [vmem:[#allocation9 + $0x4] sm:$0xf] %v304
    %337 = vst [vmem:[#allocation9 + $0x8] sm:$0xf] %v305
    %338 = vst [vmem:[#allocation9 + $0xc] sm:$0xf] %v306
    %339 = vst [vmem:[#allocation9 + $0x10] sm:$0xf] %v307
    %340 = vst [vmem:[#allocation9 + $0x14] sm:$0xf] %v308
    %341 = vst [vmem:[#allocation9 + $0x18] sm:$0xf] %v309
    %342 = vst [vmem:[#allocation9 + $0x1c] sm:$0xf] %v310
    %343 = vst [vmem:[#allocation9 + $0x20] sm:$0xf] %v311
    %344 = vst [vmem:[#allocation9 + $0x24] sm:$0xf] %v312
    %345 = vst [vmem:[#allocation9 + $0x28] sm:$0xf] %v313
    %346 = vst [vmem:[#allocation9 + $0x2c] sm:$0xf] %v314
    %347 = vst [vmem:[#allocation9 + $0x30] sm:$0xf] %v315
    %348 = vst [vmem:[#allocation9 + $0x34] sm:$0xf] %v316
    %349 = vst [vmem:[#allocation9 + $0x38] sm:$0xf] %v317
    %350 = vst [vmem:[#allocation9 + $0x3c] sm:$0xf] %v318
    // Predicated region
    $region22: #{tpu_custom_call.1} parent=1 // pred_check
      _
    $region23: #{tpu_custom_call.1} parent=1 // pred_check_branch
      %352 = sbr.rel (0) target = $region25
    $region24: #{tpu_custom_call.1} parent=1 // pred_region
      %s354 = ssub.s32 1024, 1024
      %355 = vsyncadd [#allocation6], %s354
      %s356 = sshll.u32 [#allocation9], 4
      %s357 = int_to_ptr.vmem [resolvable:$true] %s356
      %362 = dma.vmem_to_hbm [thread:$0]  %s357, 1024, %s4, [#allocation6], 64, 64, 4
    $region25: #{tpu_custom_call.1} parent=1 // pred_fallthru
      _
    // Predicated region
    $region26: #{tpu_custom_call.1} parent=1 // pred_check
      _
    $region27: #{tpu_custom_call.1} parent=1 // pred_check_branch
      %364 = sbr.rel (0) target = $region29
    $region28: #{tpu_custom_call.1} parent=1 // pred_region
      %365 = dma.done [#allocation6], 1024
    $region29: #{tpu_custom_call.1} parent=1 // pred_fallthru
      _
    %366 = vsyncpa [#allocation5], 1
    %367 = vsyncpa [#allocation8], 1
    %368 = vsyncpa [#allocation6], 1

</llo_original>
